<compile_context>
chip_gen: v7x
topology: tpu7x:2x2x1
jax: 0.10.0
libtpu: 0.0.40
codegen_flags: <defaults>
</compile_context>

<pallas_src>
import jax
import jax.numpy as jnp
from jax.experimental import pallas as pl
from jax.experimental.pallas import tpu as pltpu

DATA_SIZE = 100
ENCODER_LAYER_SIZE = [300, 50]
BN_EPS = 1e-5
LANE = 128
SUBLANE = 8
DEFAULT_TILE_B = 1024  # big tile: per-step work >> per-step overhead; still tiny in VMEM


def _round_up(n, m):
    return ((n + m - 1) // m) * m


def vae_encoder_kernel(x_ref, w1_ref, t1_ref, w2_ref, t2_ref, o_ref):
    # Layer 1: Linear (BN scale pre-folded into bf16 W) -> +shift -> ReLU (Dropout=identity).
    x = x_ref[...].astype(jnp.bfloat16)
    h = jnp.dot(x, w1_ref[...], preferred_element_type=jnp.float32)
    h = jnp.maximum(h + t1_ref[...], 0.0)
    # Layer 2: same pattern; output written at its natural 50-wide shape.
    o = jnp.dot(h.astype(jnp.bfloat16), w2_ref[...], preferred_element_type=jnp.float32)
    o_ref[...] = jnp.maximum(o + t2_ref[...], 0.0).astype(o_ref.dtype)


def prepare_encoder_params(params):
    """One-time parameter prep: fold BN scale into W, pad the hidden dim to a
    lane-dense multiple of 128, and cast weights to bf16 for the MXU.
    Zero-padded W1 columns + zero shift entries give relu(0)=0 in the padded
    hidden lanes; the matching zero-padded W2 rows contribute nothing."""
    (w1, s1, t1), (w2, s2, t2) = params
    H1 = w1.shape[1]
    H1p = _round_up(H1, LANE)
    w1p = jnp.pad(w1 * s1, ((0, 0), (0, H1p - H1))).astype(jnp.bfloat16)   # (K,   H1p)
    t1p = jnp.pad(t1.astype(jnp.float32), ((0, 0), (0, H1p - H1)))         # (1,   H1p)
    w2p = jnp.pad(w2 * s2, ((0, H1p - H1), (0, 0))).astype(jnp.bfloat16)   # (H1p, H2)
    t2p = t2.astype(jnp.float32)                                           # (1,   H2)
    return w1p, t1p, w2p, t2p


def vae_encoder(x, prepared, *, tile_b=DEFAULT_TILE_B):
    w1, t1, w2, t2 = prepared
    B, K = x.shape
    H1p = w1.shape[1]
    H2 = w2.shape[1]

    # Batch tiling: block second-to-last dim must be a multiple of 8 or the full dim.
    # Cap the tile so large batches still get >= 2 grid steps (v7x megacore).
    if B <= SUBLANE:
        tb = B  # single full-batch block (legal: equals the full array dim)
    else:
        tb = max(SUBLANE, min(tile_b, _round_up(pl.cdiv(B, 2), SUBLANE)))
    grid = (pl.cdiv(B, tb),)

    flops = 2 * B * (K * H1p + H1p * H2)
    bytes_accessed = (
        4 * B * K                       # x (f32 in HBM)
        + 2 * (K * H1p + H1p * H2)      # bf16 weights (read once)
        + 4 * (H1p + H2)                # shifts
        + 4 * B * H2                    # output
    )

    return pl.pallas_call(
        vae_encoder_kernel,
        out_shape=jax.ShapeDtypeStruct((B, H2), jnp.float32),
        grid=grid,
        in_specs=[
            pl.BlockSpec((tb, K), lambda i: (i, 0)),      # activations: stream over batch
            pl.BlockSpec((K, H1p), lambda i: (0, 0)),     # W1' resident (bf16)
            pl.BlockSpec((1, H1p), lambda i: (0, 0)),     # shift1 resident
            pl.BlockSpec((H1p, H2), lambda i: (0, 0)),    # W2' resident (bf16)
            pl.BlockSpec((1, H2), lambda i: (0, 0)),      # shift2 resident
        ],
        out_specs=pl.BlockSpec((tb, H2), lambda i: (i, 0)),
        compiler_params=pltpu.CompilerParams(
            dimension_semantics=("parallel",),
            vmem_limit_bytes=32 * 1024 * 1024,
        ),
        cost_estimate=pl.CostEstimate(
            flops=flops, transcendentals=0, bytes_accessed=bytes_accessed
        ),
    )(x, w1, t1, w2, t2)


def init_params(key):
    """Deterministic synthetic parameters matching the PyTorch module's shapes,
    with BN (eval mode) + linear bias folded into per-feature (scale, shift)."""
    sizes = [DATA_SIZE] + ENCODER_LAYER_SIZE
    params = []
    for i in range(len(ENCODER_LAYER_SIZE)):
        fan_in, fan_out = sizes[i], sizes[i + 1]
        key, kw, kb, kg, kbe, km, kv = jax.random.split(key, 7)
        bound = 1.0 / (fan_in ** 0.5)
        # nn.Linear: weight (out, in), bias (out,)  -> stored here as W (in, out)
        W = jax.random.uniform(kw, (fan_in, fan_out), jnp.float32, -bound, bound)
        b = jax.random.uniform(kb, (fan_out,), jnp.float32, -bound, bound)
        # nn.BatchNorm1d(eval): gamma, beta, running_mean, running_var
        gamma = 1.0 + 0.1 * jax.random.normal(kg, (fan_out,), jnp.float32)
        beta = 0.1 * jax.random.normal(kbe, (fan_out,), jnp.float32)
        run_mean = 0.1 * jax.random.normal(km, (fan_out,), jnp.float32)
        run_var = jnp.abs(1.0 + 0.1 * jax.random.normal(kv, (fan_out,), jnp.float32))
        scale = gamma / jnp.sqrt(run_var + BN_EPS)
        shift = beta - run_mean * scale + b * scale
        params.append((W, scale.reshape(1, fan_out), shift.reshape(1, fan_out)))
    return params


def reference(x, params):
    """Pure-f32 reference (eval-mode module semantics)."""
    h = x
    for W, s, t in params:
        h = jnp.maximum(h @ W * s + t, 0.0)
    return h


if __name__ == "__main__":
    key = jax.random.PRNGKey(0)
    kx, kp = jax.random.split(key)

    batch = 8
    x = jax.random.normal(kx, (batch, DATA_SIZE), jnp.float32)

    params = init_params(kp)
    prepared = prepare_encoder_params(params)   # one-time fold / pad / bf16 cast

    out = vae_encoder(x, prepared)
    out = jax.block_until_ready(out)

    ref = reference(x, params)
    assert out.shape == (batch, ENCODER_LAYER_SIZE[-1])
    # bf16 MXU operands (f32 accumulation) -> loosened tolerance vs the f32 reference.
    assert jnp.allclose(out, ref, atol=5e-2, rtol=5e-2), "mismatch vs reference"

    print("KERNEL_OK")
</pallas_src>

<mosaic_0001>
module attributes {stable_mosaic.version = 11 : i64} {
  func.func @vae_encoder_kernel(%arg0: i32, %arg1: memref<8x100xf32, #tpu.memory_space<vmem>>, %arg2: memref<100x384xbf16, #tpu.memory_space<vmem>>, %arg3: memref<1x384xf32, #tpu.memory_space<vmem>>, %arg4: memref<384x50xbf16, #tpu.memory_space<vmem>>, %arg5: memref<1x50xf32, #tpu.memory_space<vmem>>, %arg6: memref<8x50xf32, #tpu.memory_space<vmem>>) attributes {dimension_semantics = [#tpu.dimension_semantics<parallel>], iteration_bounds = array<i64: 1>, scalar_prefetch = 0 : i64, scratch_operands = 0 : i64, tpu.core_type = #tpu.core_type<tc>, window_params = [{transform_indices = @transform_0, window_bounds = array<i64: 8, 100>}, {pipeline_mode = #tpu.pipeline_mode<synchronous>, transform_indices = @transform_1, window_bounds = array<i64: 100, 384>}, {pipeline_mode = #tpu.pipeline_mode<synchronous>, transform_indices = @transform_2, window_bounds = array<i64: 1, 384>}, {pipeline_mode = #tpu.pipeline_mode<synchronous>, transform_indices = @transform_3, window_bounds = array<i64: 384, 50>}, {pipeline_mode = #tpu.pipeline_mode<synchronous>, transform_indices = @transform_4, window_bounds = array<i64: 1, 50>}, {transform_indices = @transform_5, window_bounds = array<i64: 8, 50>}]} {
    %c0 = arith.constant 0 : index
    %c0_0 = arith.constant 0 : index
    %0 = vector.load %arg1[%c0, %c0_0] : memref<8x100xf32, #tpu.memory_space<vmem>>, vector<8x100xf32>
    %1 = arith.truncf %0 : vector<8x100xf32> to vector<8x100xbf16>
    %c0_1 = arith.constant 0 : index
    %c0_2 = arith.constant 0 : index
    %2 = vector.load %arg2[%c0_1, %c0_2] : memref<100x384xbf16, #tpu.memory_space<vmem>>, vector<100x384xbf16>
    %cst = arith.constant dense<0.000000e+00> : vector<8x384xf32>
    %3 = tpu.matmul %1, %2, %cst {dimension_numbers = #tpu.dot_dimension_numbers<[1], [0], [0], [1], [0, 0, 1, 1], [], []>} : vector<8x100xbf16>, vector<100x384xbf16>, vector<8x384xf32> -> vector<8x384xf32>
    %c0_3 = arith.constant 0 : index
    %c0_4 = arith.constant 0 : index
    %4 = vector.load %arg3[%c0_3, %c0_4] : memref<1x384xf32, #tpu.memory_space<vmem>>, vector<1x384xf32>
    %5 = vector.broadcast %4 : vector<1x384xf32> to vector<8x384xf32>
    %6 = arith.addf %3, %5 : vector<8x384xf32>
    %cst_5 = arith.constant 0.000000e+00 : f32
    %7 = vector.broadcast %cst_5 : f32 to vector<8x384xf32>
    %8 = arith.maximumf %6, %7 : vector<8x384xf32>
    %9 = arith.truncf %8 : vector<8x384xf32> to vector<8x384xbf16>
    %c0_6 = arith.constant 0 : index
    %c0_7 = arith.constant 0 : index
    %10 = vector.load %arg4[%c0_6, %c0_7] : memref<384x50xbf16, #tpu.memory_space<vmem>>, vector<384x50xbf16>
    %cst_8 = arith.constant dense<0.000000e+00> : vector<8x50xf32>
    %11 = tpu.matmul %9, %10, %cst_8 {dimension_numbers = #tpu.dot_dimension_numbers<[1], [0], [0], [1], [0, 0, 1, 1], [], []>} : vector<8x384xbf16>, vector<384x50xbf16>, vector<8x50xf32> -> vector<8x50xf32>
    %c0_9 = arith.constant 0 : index
    %c0_10 = arith.constant 0 : index
    %12 = vector.load %arg5[%c0_9, %c0_10] : memref<1x50xf32, #tpu.memory_space<vmem>>, vector<1x50xf32>
    %13 = vector.broadcast %12 : vector<1x50xf32> to vector<8x50xf32>
    %14 = arith.addf %11, %13 : vector<8x50xf32>
    %cst_11 = arith.constant 0.000000e+00 : f32
    %15 = vector.broadcast %cst_11 : f32 to vector<8x50xf32>
    %16 = arith.maximumf %14, %15 : vector<8x50xf32>
    %c0_12 = arith.constant 0 : index
    %c0_13 = arith.constant 0 : index
    %17 = vector.load %arg6[%c0_12, %c0_13] : memref<8x50xf32, #tpu.memory_space<vmem>>, vector<8x50xf32>
    tpu.vector_store %arg6[%c0_12, %c0_13], %16 {strides = array<i32>} : memref<8x50xf32, #tpu.memory_space<vmem>>, vector<8x50xf32>,
    return
  }
  func.func @transform_0(%arg0: i32) -> (i32, i32) {
    %c0_i32 = arith.constant 0 : i32
    %c0_i32_0 = arith.constant 0 : i32
    return %arg0, %c0_i32 : i32, i32
  }
  func.func @transform_1(%arg0: i32) -> (i32, i32) {
    %c0_i32 = arith.constant 0 : i32
    %c0_i32_0 = arith.constant 0 : i32
    %c0_i32_1 = arith.constant 0 : i32
    return %c0_i32, %c0_i32_0 : i32, i32
  }
  func.func @transform_2(%arg0: i32) -> (i32, i32) {
    %c0_i32 = arith.constant 0 : i32
    %c0_i32_0 = arith.constant 0 : i32
    %c0_i32_1 = arith.constant 0 : i32
    return %c0_i32, %c0_i32_0 : i32, i32
  }
  func.func @transform_3(%arg0: i32) -> (i32, i32) {
    %c0_i32 = arith.constant 0 : i32
    %c0_i32_0 = arith.constant 0 : i32
    %c0_i32_1 = arith.constant 0 : i32
    return %c0_i32, %c0_i32_0 : i32, i32
  }
  func.func @transform_4(%arg0: i32) -> (i32, i32) {
    %c0_i32 = arith.constant 0 : i32
    %c0_i32_0 = arith.constant 0 : i32
    %c0_i32_1 = arith.constant 0 : i32
    return %c0_i32, %c0_i32_0 : i32, i32
  }
  func.func @transform_5(%arg0: i32) -> (i32, i32) {
    %c0_i32 = arith.constant 0 : i32
    %c0_i32_0 = arith.constant 0 : i32
    return %arg0, %c0_i32 : i32, i32
  }
}

</mosaic_0001>

<llo_original>
// kernel: tpu_custom_call.1
$region0: #{tpu_custom_call.1}
  #allocation0 [shape = 'u32[]', space=smem, size = 0x4, offset = 0x4, fixed_abs, tag = 'smem constant byte address 0x4 - core index']
  #allocation1 [shape = 'u32[144,128]{1,0:T(1,128)}', space=vmem, size = 0x12000, scoped, tag = 'internal scratch']
  %s0 = inlined_call_operand.vmem [shape: f32[8,100], index: 0, kind: input, shape index: {}]
  %s1 = inlined_call_operand.vmem [shape: bf16[100,384], index: 1, kind: input, shape index: {}]
  %s2 = inlined_call_operand.vmem [shape: f32[1,384], index: 2, kind: input, shape index: {}]
  %s3 = inlined_call_operand.vmem [shape: bf16[384,50], index: 3, kind: input, shape index: {}]
  %s4 = inlined_call_operand.vmem [shape: f32[1,50], index: 4, kind: input, shape index: {}]
  %s5 = inlined_call_operand.hbm [shape: f32[8,50], index: 5, kind: output, shape index: {}]
  %s6 = sld [smem:[#allocation0]]
  $region30: #{tpu_custom_call.1} parent=0
    _
  %s8 = ssub.s32 1, %s6
  %s9 = scalar_select 0, %s8, %s6
  $region1: #{tpu_custom_call.1} parent=0
    #allocation2 [shape = 'u8[4096]{0}', space=vmem, size = 0x1000, scoped, tag = 'output window, operand 0, single buffered']
    #allocation3 [shape = 's32[1]{0}', space=sflag, size = 0x4, scoped, tag = 'scoped memory for tpu_custom_call.1']
    %10 = vsyncpa [#allocation3], 0
    // Predicated region
    $region2: #{tpu_custom_call.1} parent=1 // pred_check
      _
    $region3: #{tpu_custom_call.1} parent=1 // pred_check_branch
      %12 = sbr.rel (0) target = $region5
    $region4: #{tpu_custom_call.1} parent=1 // pred_region
      _
    $region5: #{tpu_custom_call.1} parent=1 // pred_fallthru
      _
    // Predicated region
    $region6: #{tpu_custom_call.1} parent=1 // pred_check
      _
    $region7: #{tpu_custom_call.1} parent=1 // pred_check_branch
      %14 = sbr.rel (0) target = $region9
    $region8: #{tpu_custom_call.1} parent=1 // pred_region
      _
    $region9: #{tpu_custom_call.1} parent=1 // pred_fallthru
      _
    // Predicated region
    $region10: #{tpu_custom_call.1} parent=1 // pred_check
      _
    $region11: #{tpu_custom_call.1} parent=1 // pred_check_branch
      %16 = sbr.rel (0) target = $region13
    $region12: #{tpu_custom_call.1} parent=1 // pred_region
      _
    $region13: #{tpu_custom_call.1} parent=1 // pred_fallthru
      _
    // Predicated region
    $region14: #{tpu_custom_call.1} parent=1 // pred_check
      _
    $region15: #{tpu_custom_call.1} parent=1 // pred_check_branch
      %18 = sbr.rel (0) target = $region17
    $region16: #{tpu_custom_call.1} parent=1 // pred_region
      _
    $region17: #{tpu_custom_call.1} parent=1 // pred_fallthru
      _
    // Predicated region
    $region18: #{tpu_custom_call.1} parent=1 // pred_check
      _
    $region19: #{tpu_custom_call.1} parent=1 // pred_check_branch
      %20 = sbr.rel (0) target = $region21
    $region20: #{tpu_custom_call.1} parent=1 // pred_region
      _
    $region21: #{tpu_custom_call.1} parent=1 // pred_fallthru
      _
    %v22 = vld [vmem:[%s0] sm:$0xff]
    %v23 = vpack.c.bf16 %v22, %v22
    %v24 = vld [vmem:[%s1] sm:$0xff]
    %v25 = vld [vmem:[%s1 + $0x8] sm:$0xf]
    %v26 = vld [vmem:[%s1 + $0xc] sm:$0xff]
    %v27 = vld [vmem:[%s1 + $0x14] sm:$0xf]
    %v28 = vld [vmem:[%s1 + $0x18] sm:$0xff]
    %v29 = vld [vmem:[%s1 + $0x20] sm:$0xf]
    %v30 = vld [vmem:[%s1 + $0x24] sm:$0xff]
    %v31 = vld [vmem:[%s1 + $0x2c] sm:$0xf]
    %v32 = vld [vmem:[%s1 + $0x30] sm:$0xff]
    %v33 = vld [vmem:[%s1 + $0x38] sm:$0xf]
    %v34 = vld [vmem:[%s1 + $0x3c] sm:$0xff]
    %v35 = vld [vmem:[%s1 + $0x44] sm:$0xf]
    %v36 = vld [vmem:[%s1 + $0x48] sm:$0xff]
    %v37 = vld [vmem:[%s1 + $0x50] sm:$0xf]
    %v38 = vld [vmem:[%s1 + $0x54] sm:$0xff]
    %v39 = vld [vmem:[%s1 + $0x5c] sm:$0xf]
    %v40 = vld [vmem:[%s1 + $0x60] sm:$0xff]
    %v41 = vld [vmem:[%s1 + $0x68] sm:$0xf]
    %v42 = vld [vmem:[%s1 + $0x6c] sm:$0xff]
    %v43 = vld [vmem:[%s1 + $0x74] sm:$0xf]
    %v44 = vld [vmem:[%s1 + $0x78] sm:$0xff]
    %v45 = vld [vmem:[%s1 + $0x80] sm:$0xf]
    %v46 = vld [vmem:[%s1 + $0x84] sm:$0xff]
    %v47 = vld [vmem:[%s1 + $0x8c] sm:$0xf]
    %v48 = vld [vmem:[%s1 + $0x90] sm:$0x33]
    %v49 = vld [vmem:[%s1 + $0x98] sm:$0x3]
    %v50 = vld [vmem:[%s2] sm:$0x7]
    %v52 = vlaneseq
    %v53 = vshrl.u32 %v52, 7
    %v54 = vsub.s32 0, %v53
    %v55 = vrot.slane %v50, %v54
    %v56 = vlaneseq
    %v57 = vshrl.u32 %v56, 7
    %v58 = vsub.s32 1, %v57
    %v59 = vrot.slane %v50, %v58
    %v60 = vlaneseq
    %v61 = vshrl.u32 %v60, 7
    %v62 = vsub.s32 2, %v61
    %v63 = vrot.slane %v50, %v62
    %v93 = vunpack.c.l.b16 %v24
    %v94 = vunpack.c.h.b16 %v24
    %v95 = vunpack.c.l.b16 %v25
    %v96 = vunpack.c.l.b16 %v26
    %v97 = vunpack.c.h.b16 %v26
    %v98 = vunpack.c.l.b16 %v27
    %v99 = vunpack.c.l.b16 %v28
    %v100 = vunpack.c.h.b16 %v28
    %v101 = vunpack.c.l.b16 %v29
    %v102 = vunpack.c.l.b16 %v30
    %v103 = vunpack.c.h.b16 %v30
    %v104 = vunpack.c.l.b16 %v31
    %v105 = vunpack.c.l.b16 %v32
    %v106 = vunpack.c.h.b16 %v32
    %v107 = vunpack.c.l.b16 %v33
    %v108 = vunpack.c.l.b16 %v34
    %v109 = vunpack.c.h.b16 %v34
    %v110 = vunpack.c.l.b16 %v35
    %v111 = vunpack.c.l.b16 %v36
    %v112 = vunpack.c.h.b16 %v36
    %v113 = vunpack.c.l.b16 %v37
    %v114 = vunpack.c.l.b16 %v38
    %v115 = vunpack.c.h.b16 %v38
    %v116 = vunpack.c.l.b16 %v39
    %v117 = vunpack.c.l.b16 %v40
    %v118 = vunpack.c.h.b16 %v40
    %v119 = vunpack.c.l.b16 %v41
    %v120 = vunpack.c.l.b16 %v42
    %v121 = vunpack.c.h.b16 %v42
    %v122 = vunpack.c.l.b16 %v43
    %v123 = vunpack.c.l.b16 %v44
    %v124 = vunpack.c.h.b16 %v44
    %v125 = vunpack.c.l.b16 %v45
    %v126 = vunpack.c.l.b16 %v46
    %v127 = vunpack.c.h.b16 %v46
    %v128 = vunpack.c.l.b16 %v47
    %v129 = vunpack.c.l.b16 %v48
    %v130 = vunpack.c.h.b16 %v48
    %v131 = vunpack.c.l.b16 %v49
    %v132 = vpack.c.b16 %v96, %v93
    %v133 = vpack.c.b16 %v97, %v94
    %v134 = vpack.c.b16 %v98, %v95
    %v135 = vpack.c.b16 %v102, %v99
    %v136 = vpack.c.b16 %v103, %v100
    %v137 = vpack.c.b16 %v104, %v101
    %v138 = vpack.c.b16 %v108, %v105
    %v139 = vpack.c.b16 %v109, %v106
    %v140 = vpack.c.b16 %v110, %v107
    %v141 = vpack.c.b16 %v114, %v111
    %v142 = vpack.c.b16 %v115, %v112
    %v143 = vpack.c.b16 %v116, %v113
    %v144 = vpack.c.b16 %v120, %v117
    %v145 = vpack.c.b16 %v121, %v118
    %v146 = vpack.c.b16 %v122, %v119
    %v147 = vpack.c.b16 %v126, %v123
    %v148 = vpack.c.b16 %v127, %v124
    %v149 = vpack.c.b16 %v128, %v125
    %v150 = vpack.c.b16 %v129, %v129
    %v151 = vpack.c.b16 %v130, %v130
    %v152 = vpack.c.b16 %v131, %v131
    %vm171 = vcmask 818176
    %v173 = vsel %vm171, %v23, 0
    %vm175 = vcmask 1041408
    %v177 = vsel %vm175, %v150, 0
    %v180 = vsel %vm175, %v151, 0
    %v183 = vsel %vm175, %v152, 0
    %185 = vmatprep.subr.bf16.mxu0 %v133
    %186 = vmatpush1.bf16.msra.mxu0 %v132
    %187 = vmatprep.subr.bf16.mxu0 %v136
    %188 = vmatpush1.bf16.msra.mxu0 %v135
    %189 = vmatprep.subr.bf16.mxu0 %v139
    %190 = vmatpush1.bf16.msra.mxu0 %v138
    %191 = vmatprep.subr.bf16.mxu0 %v142
    %192 = vmatpush1.bf16.msra.mxu0 %v141
    %193 = vmatprep.subr.bf16.mxu0 %v145
    %194 = vmatpush1.bf16.msra.mxu0 %v144
    %195 = vmatprep.subr.bf16.mxu0 %v148
    %196 = vmatpush1.bf16.msra.mxu0 %v147
    %197 = vmatprep.subr.bf16.mxu0 %v180
    %198 = vmatpush1.bf16.msra.mxu0 %v177
    %199 = vmatprep.subr.bf16.mxu0 0
    %200 = vmatpush1.bf16.msra.mxu0 0
    %201 = vmatprep.subr.bf16.mxu0 0
    %202 = vmatpush1.bf16.msra.mxu0 0
    %203 = vmatprep.subr.bf16.mxu0 0
    %204 = vmatpush1.bf16.msra.mxu0 0
    %205 = vmatprep.subr.bf16.mxu0 0
    %206 = vmatpush1.bf16.msra.mxu0 0
    %207 = vmatprep.subr.bf16.mxu0 0
    %208 = vmatpush1.bf16.msra.mxu0 0
    %209 = vmatprep.subr.bf16.mxu0 0
    %210 = vmatpush1.bf16.msra.mxu0 0
    %211 = vmatprep.subr.bf16.mxu0 0
    %212 = vmatpush1.bf16.msra.mxu0 0
    %213 = vmatprep.subr.bf16.mxu0 0
    %214 = vmatpush1.bf16.msra.mxu0 0
    %215 = vmatprep.subr.bf16.mxu0 0
    %216 = vmatpush1.bf16.msra.mxu0 0
    %217 = vmatprep.mubr.bf16.mxu0 0
    %218 = vmatmul.mubr.bf16.gmra.mrb[0].mxu0 %v173
    %v219 = vpop.f32.mrb[0].mxu0
    %v220 = vadd.f32 %v55, %v219
    %v221 = vpop.f32.mrb[0].mxu0
    %v222 = vadd.f32 %v59, %v221
    %v223 = vpop.f32.mrb[0].mxu0
    %v224 = vpop.f32.mrb[0].mxu0
    %225 = vdwg.mxu0
    %226 = vmatprep.subr.bf16.mxu0 0
    %227 = vmatpush1.bf16.msra.mxu0 %v134
    %228 = vmatprep.subr.bf16.mxu0 0
    %229 = vmatpush1.bf16.msra.mxu0 %v137
    %230 = vmatprep.subr.bf16.mxu0 0
    %231 = vmatpush1.bf16.msra.mxu0 %v140
    %232 = vmatprep.subr.bf16.mxu0 0
    %233 = vmatpush1.bf16.msra.mxu0 %v143
    %234 = vmatprep.subr.bf16.mxu0 0
    %235 = vmatpush1.bf16.msra.mxu0 %v146
    %236 = vmatprep.subr.bf16.mxu0 0
    %237 = vmatpush1.bf16.msra.mxu0 %v149
    %238 = vmatprep.subr.bf16.mxu0 0
    %239 = vmatpush1.bf16.msra.mxu0 %v183
    %240 = vmatprep.subr.bf16.mxu0 0
    %241 = vmatpush1.bf16.msra.mxu0 0
    %242 = vmatprep.subr.bf16.mxu0 0
    %243 = vmatpush1.bf16.msra.mxu0 0
    %244 = vmatprep.subr.bf16.mxu0 0
    %245 = vmatpush1.bf16.msra.mxu0 0
    %246 = vmatprep.subr.bf16.mxu0 0
    %247 = vmatpush1.bf16.msra.mxu0 0
    %248 = vmatprep.subr.bf16.mxu0 0
    %249 = vmatpush1.bf16.msra.mxu0 0
    %250 = vmatprep.subr.bf16.mxu0 0
    %251 = vmatpush1.bf16.msra.mxu0 0
    %252 = vmatprep.subr.bf16.mxu0 0
    %253 = vmatpush1.bf16.msra.mxu0 0
    %254 = vmatprep.subr.bf16.mxu0 0
    %255 = vmatpush1.bf16.msra.mxu0 0
    %256 = vmatprep.subr.bf16.mxu0 0
    %257 = vmatpush1.bf16.msra.mxu0 0
    %258 = vmatprep.mubr.bf16.mxu0 0
    %259 = vmatmul.mubr.bf16.gmra.mrb[0].mxu0 %v173
    %v260 = vpop.f32.mrb[0].mxu0
    %v261 = vadd.f32 %v63, %v260
    %v262 = vpop.f32.mrb[0].mxu0
    %v263 = vpop.f32.mrb[0].mxu0
    %v264 = vpop.f32.mrb[0].mxu0
    %265 = vdwg.mxu0
    %v266 = vmax.f32 %v220, 0.0
    %v267 = vmax.f32 %v222, 0.0
    %v268 = vmax.f32 %v261, 0.0
    %v269 = vpack.c.bf16 %v266, %v266
    %v270 = vpack.c.bf16 %v267, %v267
    %v271 = vpack.c.bf16 %v268, %v268
    %v272 = vld [vmem:[%s3] sm:$0xf]
    %v273 = vld [vmem:[%s3 + $0x4] sm:$0xf]
    %v274 = vld [vmem:[%s3 + $0x8] sm:$0xf]
    %v275 = vld [vmem:[%s3 + $0xc] sm:$0xf]
    %v276 = vld [vmem:[%s3 + $0x10] sm:$0xf]
    %v277 = vld [vmem:[%s3 + $0x14] sm:$0xf]
    %v278 = vld [vmem:[%s3 + $0x18] sm:$0xf]
    %v279 = vld [vmem:[%s3 + $0x1c] sm:$0xf]
    %v280 = vld [vmem:[%s3 + $0x20] sm:$0xf]
    %v281 = vld [vmem:[%s3 + $0x24] sm:$0xf]
    %v282 = vld [vmem:[%s3 + $0x28] sm:$0xf]
    %v283 = vld [vmem:[%s3 + $0x2c] sm:$0xf]
    %v284 = vld [vmem:[%s3 + $0x30] sm:$0xf]
    %v285 = vld [vmem:[%s3 + $0x34] sm:$0xf]
    %v286 = vld [vmem:[%s3 + $0x38] sm:$0xf]
    %v287 = vld [vmem:[%s3 + $0x3c] sm:$0xf]
    %v288 = vld [vmem:[%s3 + $0x40] sm:$0xf]
    %v289 = vld [vmem:[%s3 + $0x44] sm:$0xf]
    %v290 = vld [vmem:[%s3 + $0x48] sm:$0xf]
    %v291 = vld [vmem:[%s3 + $0x4c] sm:$0xf]
    %v292 = vld [vmem:[%s3 + $0x50] sm:$0xf]
    %v293 = vld [vmem:[%s3 + $0x54] sm:$0xf]
    %v294 = vld [vmem:[%s3 + $0x58] sm:$0xf]
    %v295 = vld [vmem:[%s3 + $0x5c] sm:$0xf]
    %v296 = vld [vmem:[%s3 + $0x60] sm:$0xf]
    %v297 = vld [vmem:[%s3 + $0x64] sm:$0xf]
    %v298 = vld [vmem:[%s3 + $0x68] sm:$0xf]
    %v299 = vld [vmem:[%s3 + $0x6c] sm:$0xf]
    %v300 = vld [vmem:[%s3 + $0x70] sm:$0xf]
    %v301 = vld [vmem:[%s3 + $0x74] sm:$0xf]
    %v302 = vld [vmem:[%s3 + $0x78] sm:$0xf]
    %v303 = vld [vmem:[%s3 + $0x7c] sm:$0xf]
    %v304 = vld [vmem:[%s3 + $0x80] sm:$0xf]
    %v305 = vld [vmem:[%s3 + $0x84] sm:$0xf]
    %v306 = vld [vmem:[%s3 + $0x88] sm:$0xf]
    %v307 = vld [vmem:[%s3 + $0x8c] sm:$0xf]
    %v308 = vld [vmem:[%s3 + $0x90] sm:$0xf]
    %v309 = vld [vmem:[%s3 + $0x94] sm:$0xf]
    %v310 = vld [vmem:[%s3 + $0x98] sm:$0xf]
    %v311 = vld [vmem:[%s3 + $0x9c] sm:$0xf]
    %v312 = vld [vmem:[%s3 + $0xa0] sm:$0xf]
    %v313 = vld [vmem:[%s3 + $0xa4] sm:$0xf]
    %v314 = vld [vmem:[%s3 + $0xa8] sm:$0xf]
    %v315 = vld [vmem:[%s3 + $0xac] sm:$0xf]
    %v316 = vld [vmem:[%s3 + $0xb0] sm:$0xf]
    %v317 = vld [vmem:[%s3 + $0xb4] sm:$0xf]
    %v318 = vld [vmem:[%s3 + $0xb8] sm:$0xf]
    %v319 = vld [vmem:[%s3 + $0xbc] sm:$0xf]
    %v320 = vld [vmem:[%s4] sm:$0x1]
    %v322 = vlaneseq
    %v323 = vshrl.u32 %v322, 7
    %v324 = vsub.s32 0, %v323
    %v325 = vrot.slane %v320, %v324
    %v375 = vunpack.c.l.b16 %v272
    %v376 = vunpack.c.l.b16 %v273
    %v377 = vunpack.c.l.b16 %v274
    %v378 = vunpack.c.l.b16 %v275
    %v379 = vunpack.c.l.b16 %v276
    %v380 = vunpack.c.l.b16 %v277
    %v381 = vunpack.c.l.b16 %v278
    %v382 = vunpack.c.l.b16 %v279
    %v383 = vunpack.c.l.b16 %v280
    %v384 = vunpack.c.l.b16 %v281
    %v385 = vunpack.c.l.b16 %v282
    %v386 = vunpack.c.l.b16 %v283
    %v387 = vunpack.c.l.b16 %v284
    %v388 = vunpack.c.l.b16 %v285
    %v389 = vunpack.c.l.b16 %v286
    %v390 = vunpack.c.l.b16 %v287
    %v391 = vunpack.c.l.b16 %v288
    %v392 = vunpack.c.l.b16 %v289
    %v393 = vunpack.c.l.b16 %v290
    %v394 = vunpack.c.l.b16 %v291
    %v395 = vunpack.c.l.b16 %v292
    %v396 = vunpack.c.l.b16 %v293
    %v397 = vunpack.c.l.b16 %v294
    %v398 = vunpack.c.l.b16 %v295
    %v399 = vunpack.c.l.b16 %v296
    %v400 = vunpack.c.l.b16 %v297
    %v401 = vunpack.c.l.b16 %v298
    %v402 = vunpack.c.l.b16 %v299
    %v403 = vunpack.c.l.b16 %v300
    %v404 = vunpack.c.l.b16 %v301
    %v405 = vunpack.c.l.b16 %v302
    %v406 = vunpack.c.l.b16 %v303
    %v407 = vunpack.c.l.b16 %v304
    %v408 = vunpack.c.l.b16 %v305
    %v409 = vunpack.c.l.b16 %v306
    %v410 = vunpack.c.l.b16 %v307
    %v411 = vunpack.c.l.b16 %v308
    %v412 = vunpack.c.l.b16 %v309
    %v413 = vunpack.c.l.b16 %v310
    %v414 = vunpack.c.l.b16 %v311
    %v415 = vunpack.c.l.b16 %v312
    %v416 = vunpack.c.l.b16 %v313
    %v417 = vunpack.c.l.b16 %v314
    %v418 = vunpack.c.l.b16 %v315
    %v419 = vunpack.c.l.b16 %v316
    %v420 = vunpack.c.l.b16 %v317
    %v421 = vunpack.c.l.b16 %v318
    %v422 = vunpack.c.l.b16 %v319
    %v423 = vpack.c.b16 %v376, %v375
    %v424 = vpack.c.b16 %v378, %v377
    %v425 = vpack.c.b16 %v380, %v379
    %v426 = vpack.c.b16 %v382, %v381
    %v427 = vpack.c.b16 %v384, %v383
    %v428 = vpack.c.b16 %v386, %v385
    %v429 = vpack.c.b16 %v388, %v387
    %v430 = vpack.c.b16 %v390, %v389
    %v431 = vpack.c.b16 %v392, %v391
    %v432 = vpack.c.b16 %v394, %v393
    %v433 = vpack.c.b16 %v396, %v395
    %v434 = vpack.c.b16 %v398, %v397
    %v435 = vpack.c.b16 %v400, %v399
    %v436 = vpack.c.b16 %v402, %v401
    %v437 = vpack.c.b16 %v404, %v403
    %v438 = vpack.c.b16 %v406, %v405
    %v439 = vpack.c.b16 %v408, %v407
    %v440 = vpack.c.b16 %v410, %v409
    %v441 = vpack.c.b16 %v412, %v411
    %v442 = vpack.c.b16 %v414, %v413
    %v443 = vpack.c.b16 %v416, %v415
    %v444 = vpack.c.b16 %v418, %v417
    %v445 = vpack.c.b16 %v420, %v419
    %v446 = vpack.c.b16 %v422, %v421
    %471 = vmatprep.subr.bf16.mxu0 0
    %472 = vmatpush1.bf16.msra.mxu0 %v423
    %473 = vmatprep.subr.bf16.mxu0 0
    %474 = vmatpush1.bf16.msra.mxu0 %v424
    %475 = vmatprep.subr.bf16.mxu0 0
    %476 = vmatpush1.bf16.msra.mxu0 %v425
    %477 = vmatprep.subr.bf16.mxu0 0
    %478 = vmatpush1.bf16.msra.mxu0 %v426
    %479 = vmatprep.subr.bf16.mxu0 0
    %480 = vmatpush1.bf16.msra.mxu0 %v427
    %481 = vmatprep.subr.bf16.mxu0 0
    %482 = vmatpush1.bf16.msra.mxu0 %v428
    %483 = vmatprep.subr.bf16.mxu0 0
    %484 = vmatpush1.bf16.msra.mxu0 %v429
    %485 = vmatprep.subr.bf16.mxu0 0
    %486 = vmatpush1.bf16.msra.mxu0 %v430
    %487 = vmatprep.subr.bf16.mxu0 0
    %488 = vmatpush1.bf16.msra.mxu0 %v431
    %489 = vmatprep.subr.bf16.mxu0 0
    %490 = vmatpush1.bf16.msra.mxu0 %v432
    %491 = vmatprep.subr.bf16.mxu0 0
    %492 = vmatpush1.bf16.msra.mxu0 %v433
    %493 = vmatprep.subr.bf16.mxu0 0
    %494 = vmatpush1.bf16.msra.mxu0 %v434
    %495 = vmatprep.subr.bf16.mxu0 0
    %496 = vmatpush1.bf16.msra.mxu0 %v435
    %497 = vmatprep.subr.bf16.mxu0 0
    %498 = vmatpush1.bf16.msra.mxu0 %v436
    %499 = vmatprep.subr.bf16.mxu0 0
    %500 = vmatpush1.bf16.msra.mxu0 %v437
    %501 = vmatprep.subr.bf16.mxu0 0
    %502 = vmatpush1.bf16.msra.mxu0 %v438
    %503 = vmatprep.mubr.bf16.mxu0 %v270
    %504 = vmatmul.mubr.bf16.gmra.mrb[0].mxu0 %v269
    %v505 = vpop.f32.mrb[0].mxu0
    %v506 = vadd.f32 %v325, %v505
    %v507 = vpop.f32.mrb[0].mxu0
    %v508 = vpop.f32.mrb[0].mxu0
    %v509 = vpop.f32.mrb[0].mxu0
    %510 = vdwg.mxu0
    %511 = vmatprep.subr.bf16.mxu0 0
    %512 = vmatpush1.bf16.msra.mxu0 %v439
    %513 = vmatprep.subr.bf16.mxu0 0
    %514 = vmatpush1.bf16.msra.mxu0 %v440
    %515 = vmatprep.subr.bf16.mxu0 0
    %516 = vmatpush1.bf16.msra.mxu0 %v441
    %517 = vmatprep.subr.bf16.mxu0 0
    %518 = vmatpush1.bf16.msra.mxu0 %v442
    %519 = vmatprep.subr.bf16.mxu0 0
    %520 = vmatpush1.bf16.msra.mxu0 %v443
    %521 = vmatprep.subr.bf16.mxu0 0
    %522 = vmatpush1.bf16.msra.mxu0 %v444
    %523 = vmatprep.subr.bf16.mxu0 0
    %524 = vmatpush1.bf16.msra.mxu0 %v445
    %525 = vmatprep.subr.bf16.mxu0 0
    %526 = vmatpush1.bf16.msra.mxu0 %v446
    %527 = vmatprep.subr.bf16.mxu0 0
    %528 = vmatpush1.bf16.msra.mxu0 0
    %529 = vmatprep.subr.bf16.mxu0 0
    %530 = vmatpush1.bf16.msra.mxu0 0
    %531 = vmatprep.subr.bf16.mxu0 0
    %532 = vmatpush1.bf16.msra.mxu0 0
    %533 = vmatprep.subr.bf16.mxu0 0
    %534 = vmatpush1.bf16.msra.mxu0 0
    %535 = vmatprep.subr.bf16.mxu0 0
    %536 = vmatpush1.bf16.msra.mxu0 0
    %537 = vmatprep.subr.bf16.mxu0 0
    %538 = vmatpush1.bf16.msra.mxu0 0
    %539 = vmatprep.subr.bf16.mxu0 0
    %540 = vmatpush1.bf16.msra.mxu0 0
    %541 = vmatprep.subr.bf16.mxu0 0
    %542 = vmatpush1.bf16.msra.mxu0 0
    %543 = vmatprep.mubr.bf16.mxu0 0
    %544 = vmatmul.mubr.bf16.gmra.mrb[0].mxu0 %v271
    %v545 = vpop.f32.mrb[0].mxu0
    %v546 = vadd.f32 %v506, %v545
    %v547 = vpop.f32.mrb[0].mxu0
    %v548 = vpop.f32.mrb[0].mxu0
    %v549 = vpop.f32.mrb[0].mxu0
    %550 = vdwg.mxu0
    %v551 = vmax.f32 %v546, 0.0
    %vm552 = vcmask 408576
    %553 = vst.msk [vmem:[#allocation2] sm:$0xff] %vm552, %v551
    // Predicated region
    $region22: #{tpu_custom_call.1} parent=1 // pred_check
      _
    $region23: #{tpu_custom_call.1} parent=1 // pred_check_branch
      %555 = sbr.rel (0) target = $region25
    $region24: #{tpu_custom_call.1} parent=1 // pred_region
      %s557 = ssub.s32 128, 128
      %558 = vsyncadd [#allocation3], %s557
      %s560 = sshll.u32 [#allocation2], 4
      %s561 = int_to_ptr.vmem [resolvable:$true] %s560
      %563 = dma.vmem_to_hbm [thread:$0]  %s561, 128, %s5, [#allocation3]
    $region25: #{tpu_custom_call.1} parent=1 // pred_fallthru
      _
    // Predicated region
    $region26: #{tpu_custom_call.1} parent=1 // pred_check
      _
    $region27: #{tpu_custom_call.1} parent=1 // pred_check_branch
      %565 = sbr.rel (0) target = $region29
    $region28: #{tpu_custom_call.1} parent=1 // pred_region
      %566 = dma.done [#allocation3], 128
    $region29: #{tpu_custom_call.1} parent=1 // pred_fallthru
      _
    %567 = vsyncpa [#allocation3], 1

</llo_original>
